<compile_context>
chip_gen: v6e
topology: v6e:2x2x1
jax: 0.10.0
libtpu: 0.0.40
codegen_flags: <defaults>
</compile_context>

<pallas_src>
import functools
import math

import jax
import jax.numpy as jnp
from jax.experimental import pallas as pl
from jax.experimental.pallas import tpu as pltpu


_VMEM_LIMIT_BYTES = 32 * 1024 * 1024   # explicit scoped-VMEM limit (all gens)
_VMEM_TILE_BUDGET = 24 * 1024 * 1024   # working-set budget with headroom


def _round_up(x, m):
    return ((x + m - 1) // m) * m


def _buf_bytes(rows, cols, itemsize):
    """Physical VMEM footprint of one (rows, cols) buffer after (8,128) tiling."""
    return _round_up(max(rows, 1), 8) * _round_up(max(cols, 1), 128) * itemsize


# --------------------------------------------------------------------------
# Kernels
# --------------------------------------------------------------------------
def _fused_kernel(x_ref, wq_ref, bq_ref, wk_ref, bk_ref, o_ref, *, compute_dtype):
    """Whole-batch fused projection + score.

    x_ref: (1, N, D); weights: (D, D); bias: (1, D) f32; o_ref: (1, N, N).
    W_q / b_q already carry the 1/sqrt(D) scale.
    """
    x = x_ref[0]
    q = (jnp.dot(x, wq_ref[...], preferred_element_type=jnp.float32)
         + bq_ref[...]).astype(compute_dtype)
    k = (jnp.dot(x, wk_ref[...], preferred_element_type=jnp.float32)
         + bk_ref[...]).astype(compute_dtype)
    # Contract the last dims of both operands -> no explicit k.T materialized.
    adj = jax.lax.dot_general(
        q, k,
        dimension_numbers=(((1,), (1,)), ((), ())),
        preferred_element_type=jnp.float32)
    o_ref[0] = adj.astype(o_ref.dtype)


def _proj_kernel(x_ref, wq_ref, bq_ref, wk_ref, bk_ref, q_ref, k_ref):
    """Stage 1: Q/K projections for one (1, tm, D) row tile (weights resident)."""
    x = x_ref[0]
    q = jnp.dot(x, wq_ref[...], preferred_element_type=jnp.float32) + bq_ref[...]
    k = jnp.dot(x, wk_ref[...], preferred_element_type=jnp.float32) + bk_ref[...]
    q_ref[0] = q.astype(q_ref.dtype)
    k_ref[0] = k.astype(k_ref.dtype)


def _score_kernel(q_ref, k_ref, o_ref):
    """Stage 2: adjacency tile = q_tile @ k_tile^T (contract last dims)."""
    adj = jax.lax.dot_general(
        q_ref[0], k_ref[0],
        dimension_numbers=(((1,), (1,)), ((), ())),
        preferred_element_type=jnp.float32)
    o_ref[0] = adj.astype(o_ref.dtype)


# --------------------------------------------------------------------------
# Wrapper
# --------------------------------------------------------------------------
def adj_classifier_forward(query, w_q, b_q, w_k, b_k, *,
                           compute_dtype=jnp.bfloat16,
                           out_dtype=None,
                           force_two_stage=False):
    """query: (B, N, D) -> adjacency (B, N, N) = (xW_q+b_q)(xW_k+b_k)^T / sqrt(D).

    compute_dtype: MXU operand dtype (f32 accumulation always).  bfloat16 is
      the fast default on v5e/v6e/v7x; pass jnp.float32 for a reference-precision run.
    out_dtype: adjacency dtype; defaults to query.dtype (use jnp.bfloat16 to
      halve the writeback bytes on memory-bound shapes).
    """
    B, N, D = query.shape
    if out_dtype is None:
        out_dtype = query.dtype
    cd = jnp.dtype(compute_dtype)
    od = jnp.dtype(out_dtype)
    scale = 1.0 / math.sqrt(D)

    # Fold the 1/sqrt(D) scale into the Q projection once (tiny wrapper-side op).
    wq = (w_q * scale).astype(compute_dtype)
    wk = w_k.astype(compute_dtype)
    bq = (b_q * scale).reshape(1, D).astype(jnp.float32)   # bias add stays f32 (v5e VPU)
    bk = b_k.reshape(1, D).astype(jnp.float32)
    x = query.astype(compute_dtype)

    N8 = _round_up(N, 8)

    # ---------------- Fused single-kernel path (small/medium per batch) -----
    weights_bytes = 2 * 2 * _buf_bytes(D, D, cd.itemsize)      # W_q, W_k (2-buffered)
    fused_bytes = (weights_bytes
                   + 2 * _buf_bytes(N, D, cd.itemsize)          # x block
                   + 2 * _buf_bytes(N, N, od.itemsize)          # adjacency block
                   + 2 * _buf_bytes(N, D, 4)                    # q, k f32 intermediates
                   + _buf_bytes(N, N, 4))                       # adj f32 intermediate
    if (not force_two_stage) and fused_bytes <= _VMEM_TILE_BUDGET:
        return pl.pallas_call(
            functools.partial(_fused_kernel, compute_dtype=compute_dtype),
            out_shape=jax.ShapeDtypeStruct((B, N, N), out_dtype),
            grid_spec=pltpu.PrefetchScalarGridSpec(
                num_scalar_prefetch=0,
                grid=(B,),
                in_specs=[
                    pl.BlockSpec((1, N, D), lambda b: (b, 0, 0)),
                    pl.BlockSpec((D, D), lambda b: (0, 0)),
                    pl.BlockSpec((1, D), lambda b: (0, 0)),
                    pl.BlockSpec((D, D), lambda b: (0, 0)),
                    pl.BlockSpec((1, D), lambda b: (0, 0)),
                ],
                out_specs=pl.BlockSpec((1, N, N), lambda b: (b, 0, 0)),
            ),
            compiler_params=pltpu.CompilerParams(
                dimension_semantics=("parallel",),
                vmem_limit_bytes=_VMEM_LIMIT_BYTES),
        )(x, wq, bq, wk, bk)

    # ---------------- Stage 1: Q/K projections over (B, N, D) ---------------
    # Ragged last row-block: OOB input rows feed only OOB output rows, which
    # the masked edge store discards.
    def _stage1_bytes(tm_):
        return (weights_bytes
                + 2 * _buf_bytes(tm_, D, cd.itemsize)           # x tile
                + 2 * 2 * _buf_bytes(tm_, D, cd.itemsize)       # q, k out tiles
                + 2 * _buf_bytes(tm_, D, 4))                    # f32 intermediates

    tm = min(512, N8)
    while tm > 8 and _stage1_bytes(tm) > _VMEM_TILE_BUDGET:
        tm = max(8, tm // 2)
    # TODO(synk): for extreme D (f32 weights > VMEM) tile D with an accumulator.

    q3, k3 = pl.pallas_call(
        _proj_kernel,
        out_shape=(jax.ShapeDtypeStruct((B, N, D), compute_dtype),
                   jax.ShapeDtypeStruct((B, N, D), compute_dtype)),
        grid_spec=pltpu.PrefetchScalarGridSpec(
            num_scalar_prefetch=0,
            grid=(B, pl.cdiv(N, tm)),
            in_specs=[
                pl.BlockSpec((1, tm, D), lambda b, i: (b, i, 0)),
                pl.BlockSpec((D, D), lambda b, i: (0, 0)),   # W_q (VMEM-resident)
                pl.BlockSpec((1, D), lambda b, i: (0, 0)),
                pl.BlockSpec((D, D), lambda b, i: (0, 0)),   # W_k (VMEM-resident)
                pl.BlockSpec((1, D), lambda b, i: (0, 0)),
            ],
            out_specs=[pl.BlockSpec((1, tm, D), lambda b, i: (b, i, 0)),
                       pl.BlockSpec((1, tm, D), lambda b, i: (b, i, 0))],
        ),
        compiler_params=pltpu.CompilerParams(
            dimension_semantics=("parallel", "parallel"),
            vmem_limit_bytes=_VMEM_LIMIT_BYTES),
    )(x, wq, bq, wk, bk)

    # ---------------- Stage 2: adjacency tiles -------------------------------
    # Preferred layout: whole per-batch K VMEM-resident (constant index_map over
    # qi -> one K DMA per batch), full-row lane-dense (1, tq, N) output stores.
    def _resident_bytes(tq_):
        return (2 * _buf_bytes(N, D, cd.itemsize)               # resident K
                + 2 * _buf_bytes(tq_, D, cd.itemsize)           # q tile
                + 2 * _buf_bytes(tq_, N, od.itemsize)           # out tile
                + _buf_bytes(tq_, N, 4))                        # f32 adj intermediate

    tq_resident = None
    for cand in (512, 256, 128, N8):
        cand = min(cand, N8)
        if _resident_bytes(cand) <= _VMEM_TILE_BUDGET:
            tq_resident = cand
            break

    if tq_resident is not None:
        tq = tq_resident
        return pl.pallas_call(
            _score_kernel,
            out_shape=jax.ShapeDtypeStruct((B, N, N), out_dtype),
            grid_spec=pltpu.PrefetchScalarGridSpec(
                num_scalar_prefetch=0,
                grid=(B, pl.cdiv(N, tq)),
                in_specs=[
                    pl.BlockSpec((1, tq, D), lambda b, qi: (b, qi, 0)),
                    pl.BlockSpec((1, N, D), lambda b, qi: (b, 0, 0)),   # K resident
                ],
                out_specs=pl.BlockSpec((1, tq, N), lambda b, qi: (b, qi, 0)),
            ),
            compiler_params=pltpu.CompilerParams(
                dimension_semantics=("parallel", "parallel"),
                vmem_limit_bytes=_VMEM_LIMIT_BYTES),
        )(q3, k3)

    # Fallback for very large N*D: ki-tiled adjacency with large tq/tk so each
    # K row is re-read only N/tq times.
    tq = tk = 128
    for cand in (512, 256, 128):
        need = (2 * 2 * _buf_bytes(cand, D, cd.itemsize)        # q and k tiles
                + 2 * _buf_bytes(cand, cand, od.itemsize)       # out tile
                + _buf_bytes(cand, cand, 4))                    # f32 intermediate
        if need <= _VMEM_TILE_BUDGET:
            tq = tk = cand
            break
    return pl.pallas_call(
        _score_kernel,
        out_shape=jax.ShapeDtypeStruct((B, N, N), out_dtype),
        grid_spec=pltpu.PrefetchScalarGridSpec(
            num_scalar_prefetch=0,
            grid=(B, pl.cdiv(N, tq), pl.cdiv(N, tk)),
            in_specs=[
                pl.BlockSpec((1, tq, D), lambda b, qi, ki: (b, qi, 0)),
                pl.BlockSpec((1, tk, D), lambda b, qi, ki: (b, ki, 0)),
            ],
            out_specs=pl.BlockSpec((1, tq, tk), lambda b, qi, ki: (b, qi, ki)),
        ),
        compiler_params=pltpu.CompilerParams(
            dimension_semantics=("parallel", "parallel", "parallel"),
            vmem_limit_bytes=_VMEM_LIMIT_BYTES),
    )(q3, k3)


# --------------------------------------------------------------------------
# Reference + self-test
# --------------------------------------------------------------------------
def _reference(query, w_q, b_q, w_k, b_k):
    q = query @ w_q + b_q
    k = query @ w_k + b_k
    return jnp.einsum("bnd,bmd->bnm", q, k) / math.sqrt(query.shape[-1])


if __name__ == "__main__":
    key = jax.random.PRNGKey(0)
    B, N, D = 2, 8, 32   # batch=2, nodes/seq=8, hidden=32

    k_x, k_wq, k_bq, k_wk, k_bk = jax.random.split(key, 5)
    bound = 1.0 / math.sqrt(D)   # nn.Linear-style init, deterministic
    query = jax.random.normal(k_x, (B, N, D), dtype=jnp.float32)
    w_q = jax.random.uniform(k_wq, (D, D), jnp.float32, -bound, bound)
    b_q = jax.random.uniform(k_bq, (D,), jnp.float32, -bound, bound)
    w_k = jax.random.uniform(k_wk, (D, D), jnp.float32, -bound, bound)
    b_k = jax.random.uniform(k_bk, (D,), jnp.float32, -bound, bound)

    ref = _reference(query, w_q, b_q, w_k, b_k)

    # 1) Reference-precision fused path.
    adj = jax.block_until_ready(
        adj_classifier_forward(query, w_q, b_q, w_k, b_k,
                               compute_dtype=jnp.float32))
    assert adj.shape == (B, N, N), adj.shape
    assert jnp.allclose(adj, ref, atol=1e-5, rtol=1e-5), "f32 fused path mismatch"

    # 2) Reference-precision two-stage path (projection + VMEM-resident-K score).
    adj_2s = jax.block_until_ready(
        adj_classifier_forward(query, w_q, b_q, w_k, b_k,
                               compute_dtype=jnp.float32,
                               force_two_stage=True))
    assert jnp.allclose(adj_2s, ref, atol=1e-5, rtol=1e-5), "f32 two-stage mismatch"

    # 3) Default bf16-MXU path (f32 accumulation) — loose tolerance sanity check.
    adj_bf16 = jax.block_until_ready(
        adj_classifier_forward(query, w_q, b_q, w_k, b_k))
    assert adj_bf16.shape == (B, N, N)
    assert adj_bf16.dtype == query.dtype
    assert jnp.allclose(adj_bf16, ref, atol=1e-1, rtol=1e-1), "bf16 path mismatch"

    # 4) Larger shape exercising ragged q tiles + resident-K stage 2 + masked
    #    edge stores (N not a multiple of the 512-row q tile).
    B2, N2, D2 = 1, 640, 64
    kk = jax.random.split(jax.random.PRNGKey(1), 5)
    q2 = jax.random.normal(kk[0], (B2, N2, D2), dtype=jnp.float32)
    w_q2 = jax.random.uniform(kk[1], (D2, D2), jnp.float32, -0.1, 0.1)
    b_q2 = jax.random.uniform(kk[2], (D2,), jnp.float32, -0.1, 0.1)
    w_k2 = jax.random.uniform(kk[3], (D2, D2), jnp.float32, -0.1, 0.1)
    b_k2 = jax.random.uniform(kk[4], (D2,), jnp.float32, -0.1, 0.1)
    ref2 = _reference(q2, w_q2, b_q2, w_k2, b_k2)
    adj_big = jax.block_until_ready(
        adj_classifier_forward(q2, w_q2, b_q2, w_k2, b_k2,
                               compute_dtype=jnp.float32,
                               force_two_stage=True))
    assert adj_big.shape == (B2, N2, N2)
    assert jnp.allclose(adj_big, ref2, atol=2e-4, rtol=2e-4), "ragged two-stage mismatch"

    print("KERNEL_OK")
</pallas_src>

<mosaic_0001>
module attributes {stable_mosaic.version = 11 : i64} {
  func.func @_fused_kernel(%arg0: i32, %arg1: memref<1x8x32xf32, #tpu.memory_space<vmem>>, %arg2: memref<32x32xf32, #tpu.memory_space<vmem>>, %arg3: memref<1x32xf32, #tpu.memory_space<vmem>>, %arg4: memref<32x32xf32, #tpu.memory_space<vmem>>, %arg5: memref<1x32xf32, #tpu.memory_space<vmem>>, %arg6: memref<1x8x8xf32, #tpu.memory_space<vmem>>) attributes {dimension_semantics = [#tpu.dimension_semantics<parallel>], iteration_bounds = array<i64: 2>, scalar_prefetch = 0 : i64, scratch_operands = 0 : i64, tpu.core_type = #tpu.core_type<tc>, window_params = [{transform_indices = @transform_0, window_bounds = array<i64: 1, 8, 32>}, {pipeline_mode = #tpu.pipeline_mode<synchronous>, transform_indices = @transform_1, window_bounds = array<i64: 32, 32>}, {pipeline_mode = #tpu.pipeline_mode<synchronous>, transform_indices = @transform_2, window_bounds = array<i64: 1, 32>}, {pipeline_mode = #tpu.pipeline_mode<synchronous>, transform_indices = @transform_3, window_bounds = array<i64: 32, 32>}, {pipeline_mode = #tpu.pipeline_mode<synchronous>, transform_indices = @transform_4, window_bounds = array<i64: 1, 32>}, {transform_indices = @transform_5, window_bounds = array<i64: 1, 8, 8>}]} {
    %c0 = arith.constant 0 : index
    %c0_0 = arith.constant 0 : index
    %c0_1 = arith.constant 0 : index
    %0 = vector.load %arg1[%c0, %c0_0, %c0_1] : memref<1x8x32xf32, #tpu.memory_space<vmem>>, vector<1x8x32xf32>
    %1 = vector.shape_cast %0 : vector<1x8x32xf32> to vector<8x32xf32>
    %c0_2 = arith.constant 0 : index
    %c0_3 = arith.constant 0 : index
    %2 = vector.load %arg2[%c0_2, %c0_3] : memref<32x32xf32, #tpu.memory_space<vmem>>, vector<32x32xf32>
    %cst = arith.constant dense<0.000000e+00> : vector<8x32xf32>
    %3 = tpu.matmul %1, %2, %cst {dimension_numbers = #tpu.dot_dimension_numbers<[1], [0], [0], [1], [0, 0, 1, 1], [], []>} : vector<8x32xf32>, vector<32x32xf32>, vector<8x32xf32> -> vector<8x32xf32>
    %c0_4 = arith.constant 0 : index
    %c0_5 = arith.constant 0 : index
    %4 = vector.load %arg3[%c0_4, %c0_5] : memref<1x32xf32, #tpu.memory_space<vmem>>, vector<1x32xf32>
    %5 = vector.broadcast %4 : vector<1x32xf32> to vector<8x32xf32>
    %6 = arith.addf %3, %5 : vector<8x32xf32>
    %c0_6 = arith.constant 0 : index
    %c0_7 = arith.constant 0 : index
    %7 = vector.load %arg4[%c0_6, %c0_7] : memref<32x32xf32, #tpu.memory_space<vmem>>, vector<32x32xf32>
    %cst_8 = arith.constant dense<0.000000e+00> : vector<8x32xf32>
    %8 = tpu.matmul %1, %7, %cst_8 {dimension_numbers = #tpu.dot_dimension_numbers<[1], [0], [0], [1], [0, 0, 1, 1], [], []>} : vector<8x32xf32>, vector<32x32xf32>, vector<8x32xf32> -> vector<8x32xf32>
    %c0_9 = arith.constant 0 : index
    %c0_10 = arith.constant 0 : index
    %9 = vector.load %arg5[%c0_9, %c0_10] : memref<1x32xf32, #tpu.memory_space<vmem>>, vector<1x32xf32>
    %10 = vector.broadcast %9 : vector<1x32xf32> to vector<8x32xf32>
    %11 = arith.addf %8, %10 : vector<8x32xf32>
    %cst_11 = arith.constant dense<0.000000e+00> : vector<8x8xf32>
    %12 = tpu.matmul %6, %11, %cst_11 {dimension_numbers = #tpu.dot_dimension_numbers<[1], [1], [0], [0], [0, 0, 1, 0], [], []>} : vector<8x32xf32>, vector<8x32xf32>, vector<8x8xf32> -> vector<8x8xf32>
    %c0_12 = arith.constant 0 : index
    %c0_13 = arith.constant 0 : index
    %c0_14 = arith.constant 0 : index
    %13 = vector.load %arg6[%c0_12, %c0_13, %c0_14] : memref<1x8x8xf32, #tpu.memory_space<vmem>>, vector<1x8x8xf32>
    %14 = vector.shape_cast %13 : vector<1x8x8xf32> to vector<8x8xf32>
    %15 = vector.shape_cast %12 : vector<8x8xf32> to vector<1x8x8xf32>
    tpu.vector_store %arg6[%c0_12, %c0_13, %c0_14], %15 {strides = array<i32>} : memref<1x8x8xf32, #tpu.memory_space<vmem>>, vector<1x8x8xf32>,
    return
  }
  func.func @transform_0(%arg0: i32) -> (i32, i32, i32) {
    %c0_i32 = arith.constant 0 : i32
    %c0_i32_0 = arith.constant 0 : i32
    %c0_i32_1 = arith.constant 0 : i32
    return %arg0, %c0_i32, %c0_i32_0 : i32, i32, i32
  }
  func.func @transform_1(%arg0: i32) -> (i32, i32) {
    %c0_i32 = arith.constant 0 : i32
    %c0_i32_0 = arith.constant 0 : i32
    %c0_i32_1 = arith.constant 0 : i32
    return %c0_i32, %c0_i32_0 : i32, i32
  }
  func.func @transform_2(%arg0: i32) -> (i32, i32) {
    %c0_i32 = arith.constant 0 : i32
    %c0_i32_0 = arith.constant 0 : i32
    %c0_i32_1 = arith.constant 0 : i32
    return %c0_i32, %c0_i32_0 : i32, i32
  }
  func.func @transform_3(%arg0: i32) -> (i32, i32) {
    %c0_i32 = arith.constant 0 : i32
    %c0_i32_0 = arith.constant 0 : i32
    %c0_i32_1 = arith.constant 0 : i32
    return %c0_i32, %c0_i32_0 : i32, i32
  }
  func.func @transform_4(%arg0: i32) -> (i32, i32) {
    %c0_i32 = arith.constant 0 : i32
    %c0_i32_0 = arith.constant 0 : i32
    %c0_i32_1 = arith.constant 0 : i32
    return %c0_i32, %c0_i32_0 : i32, i32
  }
  func.func @transform_5(%arg0: i32) -> (i32, i32, i32) {
    %c0_i32 = arith.constant 0 : i32
    %c0_i32_0 = arith.constant 0 : i32
    %c0_i32_1 = arith.constant 0 : i32
    return %arg0, %c0_i32, %c0_i32_0 : i32, i32, i32
  }
}

</mosaic_0001>

<llo_original>
// kernel: tpu_custom_call.1
$region0: #{tpu_custom_call.1}
  #allocation0 [shape = 'u32[]', space=smem, size = 0x4, offset = 0x4, fixed_abs, tag = 'smem constant byte address 0x4 - core index']
  #allocation1 [shape = 'u32[144,128]{1,0:T(1,128)}', space=vmem, size = 0x12000, scoped, tag = 'internal scratch']
  %s0 = inlined_call_operand.hbm [shape: f32[2,8,32], index: 0, kind: input, shape index: {}]
  %s1 = inlined_call_operand.hbm [shape: f32[32,32], index: 1, kind: input, shape index: {}]
  %s2 = inlined_call_operand.vmem [shape: f32[1,32], index: 2, kind: input, shape index: {}]
  %s3 = inlined_call_operand.hbm [shape: f32[32,32], index: 3, kind: input, shape index: {}]
  %s4 = inlined_call_operand.vmem [shape: f32[1,32], index: 4, kind: input, shape index: {}]
  %s5 = inlined_call_operand.hbm [shape: f32[2,8,8], index: 5, kind: output, shape index: {}]
  %s6 = sld [smem:[#allocation0]]
  $region65: #{tpu_custom_call.1} parent=0
    _
  %s8 = ssub.s32 1, %s6
  %s9 = scalar_select 0, %s8, %s6
  $region1: #{tpu_custom_call.1} parent=0
    #allocation2 [shape = 'u8[8192]{0}', space=vmem, size = 0x2000, scoped, tag = 'input window, operand 0']
    #allocation3 [shape = 's32[2]{0}', space=sflag, size = 0x8, scoped, tag = 'scoped memory for tpu_custom_call.1']
    #allocation4 [shape = 's32[2]{0}', space=sflag, size = 0x8, scoped, tag = 'scoped memory for tpu_custom_call.1']
    #allocation5 [shape = 'u8[16384]{0}', space=vmem, size = 0x4000, scoped, tag = 'input window, operand 1, single buffered']
    #allocation6 [shape = 's32[1]{0}', space=sflag, size = 0x4, scoped, tag = 'scoped memory for tpu_custom_call.1']
    #allocation7 [shape = 'u8[16384]{0}', space=vmem, size = 0x4000, scoped, tag = 'input window, operand 3, single buffered']
    #allocation8 [shape = 'u8[8192]{0}', space=vmem, size = 0x2000, scoped, tag = 'output window, operand 0']
    %10 = vsyncpa [#allocation3], 0
    %s11 = scalar_lea.sflag [#allocation3], 1
    %12 = vsyncpa %s11, 0
    %13 = vsyncpa [#allocation6], 0
    %14 = vsyncpa [#allocation4], 0
    %s15 = scalar_lea.sflag [#allocation4], 1
    %16 = vsyncpa %s15, 0
    loop: start=0, step=1, limit=4
    $region2: #{tpu_custom_call.1} parent=1 // loop_pre_header
      _
    $region3: #{tpu_custom_call.1} parent=1 // loop_header
      %s18 = sphi 0, %s22
      %p19 = scmp.ge.s32.totalorder %s18, 4
      %s28 = sphi 0, %s30
      %s31 = sphi 0, %s28
      %s32 = sphi 0, %s31
      %s48 = sphi 0, %s32
      %s52 = sphi 0, %s52
      %s54 = sphi 0, %s52
      %s55 = sphi 0, %s54
      %s69 = sphi 0, %s55
      %s73 = sphi 0, %s73
      %s75 = sphi 0, %s73
      %s76 = sphi 0, %s75
      %s90 = sphi 0, %s76
      %s94 = sphi 0, %s94
      %s96 = sphi 0, %s94
      %s97 = sphi 0, %s96
      %s111 = sphi 0, %s97
      %s115 = sphi 0, %s115
      %s117 = sphi 0, %s115
      %s118 = sphi 0, %s117
      %s132 = sphi 0, %s118
      %s138 = sphi 0, %s140
      %s141 = sphi 0, %s138
      %s142 = sphi 0, %s141
      %s158 = sphi 0, %s142
    $region4: #{tpu_custom_call.1} parent=1 // loop_header_branch
      %21 = sbr.rel (%p19) target = $region8
    $region5: #{tpu_custom_call.1} parent=1 // loop_body
      %s23 = ssub.s32 %s18, 1
      %s24 = ssub.s32 %s18, 2
      %s25 = sadd.s32 %s18, 1
      %s26 = ssub.s32 %s18, %s25
      %p27 = scmp.eq.s32.totalorder %s26, 0
      %s29 = sadd.s32 %s28, 1
      %s30 = scalar_select %p27, %s28, %s29
      %p33 = pneg %p27
      %p34 = scmp.eq.s32.totalorder %s18, 1
      %p35 = por %p33, %p34
      %p36 = scmp.ne.s32.totalorder %s28, %s31
      %p37 = scmp.eq.s32.totalorder %s18, 0
      %p38 = por %p36, %p37
      %p39 = scmp.ne.s32.totalorder %s28, %s31
      %p40 = scmp.eq.s32.totalorder %s23, 1
      %p41 = por %p39, %p40
      %p42 = scmp.ne.s32.totalorder %s31, %s32
      %p43 = scmp.eq.s32.totalorder %s23, 0
      %p44 = por %p42, %p43
      %p45 = scmp.ne.s32.totalorder %s31, %s32
      %p46 = scmp.eq.s32.totalorder %s24, 1
      %p47 = por %p45, %p46
      %p49 = scmp.ne.s32.totalorder %s32, %s48
      %p50 = scmp.eq.s32.totalorder %s24, 0
      %p51 = por %p49, %p50
      %s53 = sadd.s32 %s52, 1
      %p56 = scmp.eq.s32.totalorder %s18, 1
      %p57 = scmp.ne.s32.totalorder %s52, %s54
      %p58 = scmp.eq.s32.totalorder %s18, 0
      %p59 = por %p57, %p58
      %p60 = scmp.ne.s32.totalorder %s52, %s54
      %p61 = scmp.eq.s32.totalorder %s23, 1
      %p62 = por %p60, %p61
      %p63 = scmp.ne.s32.totalorder %s54, %s55
      %p64 = scmp.eq.s32.totalorder %s23, 0
      %p65 = por %p63, %p64
      %p66 = scmp.ne.s32.totalorder %s54, %s55
      %p67 = scmp.eq.s32.totalorder %s24, 1
      %p68 = por %p66, %p67
      %p70 = scmp.ne.s32.totalorder %s55, %s69
      %p71 = scmp.eq.s32.totalorder %s24, 0
      %p72 = por %p70, %p71
      %s74 = sadd.s32 %s73, 1
      %p77 = scmp.eq.s32.totalorder %s18, 1
      %p78 = scmp.ne.s32.totalorder %s73, %s75
      %p79 = scmp.eq.s32.totalorder %s18, 0
      %p80 = por %p78, %p79
      %p81 = scmp.ne.s32.totalorder %s73, %s75
      %p82 = scmp.eq.s32.totalorder %s23, 1
      %p83 = por %p81, %p82
      %p84 = scmp.ne.s32.totalorder %s75, %s76
      %p85 = scmp.eq.s32.totalorder %s23, 0
      %p86 = por %p84, %p85
      %p87 = scmp.ne.s32.totalorder %s75, %s76
      %p88 = scmp.eq.s32.totalorder %s24, 1
      %p89 = por %p87, %p88
      %p91 = scmp.ne.s32.totalorder %s76, %s90
      %p92 = scmp.eq.s32.totalorder %s24, 0
      %p93 = por %p91, %p92
      %s95 = sadd.s32 %s94, 1
      %p98 = scmp.eq.s32.totalorder %s18, 1
      %p99 = scmp.ne.s32.totalorder %s94, %s96
      %p100 = scmp.eq.s32.totalorder %s18, 0
      %p101 = por %p99, %p100
      %p102 = scmp.ne.s32.totalorder %s94, %s96
      %p103 = scmp.eq.s32.totalorder %s23, 1
      %p104 = por %p102, %p103
      %p105 = scmp.ne.s32.totalorder %s96, %s97
      %p106 = scmp.eq.s32.totalorder %s23, 0
      %p107 = por %p105, %p106
      %p108 = scmp.ne.s32.totalorder %s96, %s97
      %p109 = scmp.eq.s32.totalorder %s24, 1
      %p110 = por %p108, %p109
      %p112 = scmp.ne.s32.totalorder %s97, %s111
      %p113 = scmp.eq.s32.totalorder %s24, 0
      %p114 = por %p112, %p113
      %s116 = sadd.s32 %s115, 1
      %p119 = scmp.eq.s32.totalorder %s18, 1
      %p120 = scmp.ne.s32.totalorder %s115, %s117
      %p121 = scmp.eq.s32.totalorder %s18, 0
      %p122 = por %p120, %p121
      %p123 = scmp.ne.s32.totalorder %s115, %s117
      %p124 = scmp.eq.s32.totalorder %s23, 1
      %p125 = por %p123, %p124
      %p126 = scmp.ne.s32.totalorder %s117, %s118
      %p127 = scmp.eq.s32.totalorder %s23, 0
      %p128 = por %p126, %p127
      %p129 = scmp.ne.s32.totalorder %s117, %s118
      %p130 = scmp.eq.s32.totalorder %s24, 1
      %p131 = por %p129, %p130
      %p133 = scmp.ne.s32.totalorder %s118, %s132
      %p134 = scmp.eq.s32.totalorder %s24, 0
      %p135 = por %p133, %p134
      %s136 = ssub.s32 %s18, %s25
      %p137 = scmp.eq.s32.totalorder %s136, 0
      %s139 = sadd.s32 %s138, 1
      %s140 = scalar_select %p137, %s138, %s139
      %p143 = pneg %p137
      %p144 = scmp.eq.s32.totalorder %s18, 1
      %p145 = por %p143, %p144
      %p146 = scmp.ne.s32.totalorder %s138, %s141
      %p147 = scmp.eq.s32.totalorder %s18, 0
      %p148 = por %p146, %p147
      %p149 = scmp.ne.s32.totalorder %s138, %s141
      %p150 = scmp.eq.s32.totalorder %s23, 1
      %p151 = por %p149, %p150
      %p152 = scmp.ne.s32.totalorder %s141, %s142
      %p153 = scmp.eq.s32.totalorder %s23, 0
      %p154 = por %p152, %p153
      %p155 = scmp.ne.s32.totalorder %s141, %s142
      %p156 = scmp.eq.s32.totalorder %s24, 1
      %p157 = por %p155, %p156
      %p159 = scmp.ne.s32.totalorder %s142, %s158
      %p160 = scmp.eq.s32.totalorder %s24, 0
      %p161 = por %p159, %p160
      %p162 = scmp.le.s32.totalorder 1, %s18
      %p163 = scmp.lt.s32.totalorder %s18, 3
      %p164 = pnand %p162, %p163
      %p165 = pneg %p164
      // Predicated region
      $region9: #{tpu_custom_call.1} parent=5 // pred_check
        _
      $region10: #{tpu_custom_call.1} parent=5 // pred_check_branch
        %167 = sbr.rel (%p164) target = $region12
      $region11: #{tpu_custom_call.1} parent=5 // pred_region
        %s168 = ssub.s32 %s18, 1
        // Predicated region
        $region13: #{tpu_custom_call.1} parent=11 // pred_check
          %p169 = pneg %p65
        $region14: #{tpu_custom_call.1} parent=11 // pred_check_branch
          %171 = sbr.rel (%p169) target = $region16
        $region15: #{tpu_custom_call.1} parent=11 // pred_region
          %s173 = ssub.s32 512, 512
          %174 = vsyncadd [#allocation6], %s173
          %s175 = sshll.u32 [#allocation5], 4
          %s176 = int_to_ptr.vmem [resolvable:$true] %s175
          %181 = dma.hbm_to_vmem [thread:$0]  %s1, 512, %s176, [#allocation6], 128, 128, 8
        $region16: #{tpu_custom_call.1} parent=11 // pred_fallthru
          _
        // Predicated region
        $region17: #{tpu_custom_call.1} parent=11 // pred_check
          %p182 = pneg %p86
        $region18: #{tpu_custom_call.1} parent=11 // pred_check_branch
          %184 = sbr.rel (%p182) target = $region20
        $region19: #{tpu_custom_call.1} parent=11 // pred_region
          _
        $region20: #{tpu_custom_call.1} parent=11 // pred_fallthru
          _
        // Predicated region
        $region21: #{tpu_custom_call.1} parent=11 // pred_check
          %p185 = pneg %p107
        $region22: #{tpu_custom_call.1} parent=11 // pred_check_branch
          %187 = sbr.rel (%p185) target = $region24
        $region23: #{tpu_custom_call.1} parent=11 // pred_region
          %s189 = ssub.s32 512, 512
          %190 = vsyncadd [#allocation6], %s189
          %s191 = sshll.u32 [#allocation7], 4
          %s192 = int_to_ptr.vmem [resolvable:$true] %s191
          %197 = dma.hbm_to_vmem [thread:$0]  %s3, 512, %s192, [#allocation6], 128, 128, 8
        $region24: #{tpu_custom_call.1} parent=11 // pred_fallthru
          _
        // Predicated region
        $region25: #{tpu_custom_call.1} parent=11 // pred_check
          %p198 = pneg %p128
        $region26: #{tpu_custom_call.1} parent=11 // pred_check_branch
          %200 = sbr.rel (%p198) target = $region28
        $region27: #{tpu_custom_call.1} parent=11 // pred_region
          _
        $region28: #{tpu_custom_call.1} parent=11 // pred_fallthru
          _
      $region12: #{tpu_custom_call.1} parent=5 // pred_fallthru
        _
      %p201 = scmp.lt.s32.totalorder %s18, 2
      // Predicated region
      $region29: #{tpu_custom_call.1} parent=5 // pred_check
        %p202 = pneg %p201
      $region30: #{tpu_custom_call.1} parent=5 // pred_check_branch
        %204 = sbr.rel (%p202) target = $region32
      $region31: #{tpu_custom_call.1} parent=5 // pred_region
        // Predicated region
        $region33: #{tpu_custom_call.1} parent=31 // pred_check
          %p205 = pneg %p38
        $region34: #{tpu_custom_call.1} parent=31 // pred_check_branch
          %207 = sbr.rel (%p205) target = $region36
        $region35: #{tpu_custom_call.1} parent=31 // pred_region
          %s208 = sand.u32 %s28, 1
          %s209 = scalar_lea.sflag [#allocation3], %s208
          %s210 = sand.u32 %s28, 1
          %s211 = smul.addr %s210, 8
          %s212 = scalar_lea.vmem [#allocation2], %s211
          %s214 = ssub.s32 128, 128
          %215 = vsyncadd %s209, %s214
          %s216 = smul.addr %s18, 128
          %s217 = scalar_lea.hbm %s0, %s216
          %s219 = sshll.u32 %s212, 4
          %s220 = int_to_ptr.vmem [resolvable:$true] %s219
          %222 = dma.hbm_to_vmem [thread:$0]  %s217, 128, %s220, %s209
        $region36: #{tpu_custom_call.1} parent=31 // pred_fallthru
          _
      $region32: #{tpu_custom_call.1} parent=5 // pred_fallthru
        _
      %p223 = scmp.le.s32.totalorder 1, %s18
      %p224 = scmp.lt.s32.totalorder %s18, 3
      %p225 = pnand %p223, %p224
      %p226 = pneg %p225
      // Predicated region
      $region37: #{tpu_custom_call.1} parent=5 // pred_check
        _
      $region38: #{tpu_custom_call.1} parent=5 // pred_check_branch
        %228 = sbr.rel (%p225) target = $region40
      $region39: #{tpu_custom_call.1} parent=5 // pred_region
        %s229 = ssub.s32 %s18, 1
        %s230 = sand.u32 %s31, 1
        %s231 = scalar_lea.sflag [#allocation3], %s230
        %s232 = sand.u32 %s31, 1
        %s233 = smul.addr %s232, 8
        %s234 = scalar_lea.vmem [#allocation2], %s233
        // Predicated region
        $region41: #{tpu_custom_call.1} parent=39 // pred_check
          %p235 = pneg %p44
        $region42: #{tpu_custom_call.1} parent=39 // pred_check_branch
          %237 = sbr.rel (%p235) target = $region44
        $region43: #{tpu_custom_call.1} parent=39 // pred_region
          %238 = dma.done %s231, 128
        $region44: #{tpu_custom_call.1} parent=39 // pred_fallthru
          _
        // Predicated region
        $region45: #{tpu_custom_call.1} parent=39 // pred_check
          %p239 = pneg %p65
        $region46: #{tpu_custom_call.1} parent=39 // pred_check_branch
          %241 = sbr.rel (%p239) target = $region48
        $region47: #{tpu_custom_call.1} parent=39 // pred_region
          %242 = dma.done [#allocation6], 512
        $region48: #{tpu_custom_call.1} parent=39 // pred_fallthru
          _
        // Predicated region
        $region49: #{tpu_custom_call.1} parent=39 // pred_check
          %p243 = pneg %p107
        $region50: #{tpu_custom_call.1} parent=39 // pred_check_branch
          %245 = sbr.rel (%p243) target = $region52
        $region51: #{tpu_custom_call.1} parent=39 // pred_region
          %246 = dma.done [#allocation6], 512
        $region52: #{tpu_custom_call.1} parent=39 // pred_fallthru
          _
        %s247 = sand.u32 %s31, 1
        %s248 = scalar_lea.sflag [#allocation3], %s247
        %s249 = sand.u32 %s31, 1
        %s250 = smul.addr %s249, 8
        %s251 = scalar_lea.vmem [#allocation2], %s250
        %p252 = pneg %p44
        %p253 = pneg %p41
        %p254 = pneg %p65
        %p255 = pneg %p62
        %p256 = pneg %p86
        %p257 = pneg %p83
        %p258 = pneg %p107
        %p259 = pneg %p104
        %p260 = pneg %p128
        %p261 = pneg %p125
        %p262 = pneg %p154
        %p263 = pneg %p151
        %s264 = sand.u32 %s141, 1
        %s265 = scalar_lea.sflag [#allocation4], %s264
        %s266 = sand.u32 %s141, 1
        %s267 = smul.addr %s266, 8
        %s268 = scalar_lea.vmem [#allocation8], %s267
        %v269 = vld [vmem:[%s234] sm:$0xff]
        %v270 = vld [vmem:[#allocation5] sm:$0xff]
        %v271 = vld [vmem:[#allocation5 + $0x8] sm:$0xff]
        %v272 = vld [vmem:[#allocation5 + $0x10] sm:$0xff]
        %v273 = vld [vmem:[#allocation5 + $0x18] sm:$0xff]
        %v274 = vld [vmem:[%s2] sm:$0x1]
        %v276 = vlaneseq
        %v277 = vshrl.u32 %v276, 7
        %v278 = vsub.s32 0, %v277
        %v279 = vrot.slane %v274, %v278
        %vm281 = vcmask 261120
        %v283 = vsel %vm281, %v269, 0
        %285 = vmatprep.subr.mxu0 0.0
        %286 = vmatpush1.msra.mxu0 0.0
        %287 = vmatprep.subr.mxu0 0.0
        %288 = vmatpush1.msra.mxu0 0.0
        %289 = vmatprep.subr.mxu0 0.0
        %290 = vmatpush1.msra.mxu0 0.0
        %291 = vmatprep.subr.mxu0 0.0
        %292 = vmatpush1.msra.mxu0 0.0
        %293 = vmatprep.subr.mxu0 0.0
        %294 = vmatpush1.msra.mxu0 0.0
        %295 = vmatprep.subr.mxu0 0.0
        %296 = vmatpush1.msra.mxu0 0.0
        %297 = vmatprep.subr.mxu0 0.0
        %298 = vmatpush1.msra.mxu0 0.0
        %299 = vmatprep.subr.mxu0 0.0
        %300 = vmatpush1.msra.mxu0 0.0
        %301 = vmatprep.subr.mxu0 0.0
        %302 = vmatpush1.msra.mxu0 0.0
        %303 = vmatprep.subr.mxu0 0.0
        %304 = vmatpush1.msra.mxu0 0.0
        %305 = vmatprep.subr.mxu0 0.0
        %306 = vmatpush1.msra.mxu0 0.0
        %307 = vmatprep.subr.mxu0 0.0
        %308 = vmatpush1.msra.mxu0 0.0
        %309 = vmatprep.subr.mxu0 0.0
        %310 = vmatpush1.msra.mxu0 %v273
        %311 = vmatprep.subr.mxu0 0.0
        %312 = vmatpush1.msra.mxu0 %v272
        %313 = vmatprep.subr.mxu0 0.0
        %314 = vmatpush1.msra.mxu0 %v271
        %315 = vmatprep.subr.mxu0 0.0
        %316 = vmatpush1.msra.mxu0 %v270
        %317 = vmatprep.subr.mxu0 0.0
        %318 = vmatpush2.msra.mxu0 0.0
        %319 = vmatprep.subr.mxu0 0.0
        %320 = vmatpush2.msra.mxu0 0.0
        %321 = vmatprep.subr.mxu0 0.0
        %322 = vmatpush2.msra.mxu0 0.0
        %323 = vmatprep.subr.mxu0 0.0
        %324 = vmatpush2.msra.mxu0 0.0
        %325 = vmatprep.subr.mxu0 0.0
        %326 = vmatpush2.msra.mxu0 0.0
        %327 = vmatprep.subr.mxu0 0.0
        %328 = vmatpush2.msra.mxu0 0.0
        %329 = vmatprep.subr.mxu0 0.0
        %330 = vmatpush2.msra.mxu0 0.0
        %331 = vmatprep.subr.mxu0 0.0
        %332 = vmatpush2.msra.mxu0 0.0
        %333 = vmatprep.subr.mxu0 0.0
        %334 = vmatpush2.msra.mxu0 0.0
        %335 = vmatprep.subr.mxu0 0.0
        %336 = vmatpush2.msra.mxu0 0.0
        %337 = vmatprep.subr.mxu0 0.0
        %338 = vmatpush2.msra.mxu0 0.0
        %339 = vmatprep.subr.mxu0 0.0
        %340 = vmatpush2.msra.mxu0 0.0
        %341 = vmatprep.subr.mxu0 0.0
        %342 = vmatpush2.msra.mxu0 0.0
        %343 = vmatprep.subr.mxu0 0.0
        %344 = vmatpush2.msra.mxu0 0.0
        %345 = vmatprep.subr.mxu0 0.0
        %346 = vmatpush2.msra.mxu0 0.0
        %347 = vmatprep.subr.mxu0 0.0
        %348 = vmatpush2.msra.mxu0 0.0
        %349 = vmatprep.mubr.f32.mxu0 0.0
        %350 = vmatmul.mubr.f32.gmra.mxu0 %v283
        %v351 = vpop.f32.mrf.mxu0
        %v352 = vadd.f32 %v279, %v351
        %v353 = vpop.f32.mrf.mxu0
        %354 = vdwg.mxu0
        %v355 = vld [vmem:[#allocation7] sm:$0xff]
        %v356 = vld [vmem:[#allocation7 + $0x8] sm:$0xff]
        %v357 = vld [vmem:[#allocation7 + $0x10] sm:$0xff]
        %v358 = vld [vmem:[#allocation7 + $0x18] sm:$0xff]
        %v359 = vld [vmem:[%s4] sm:$0x1]
        %v361 = vlaneseq
        %v362 = vshrl.u32 %v361, 7
        %v363 = vsub.s32 0, %v362
        %v364 = vrot.slane %v359, %v363
        %366 = vmatprep.subr.mxu0 0.0
        %367 = vmatpush1.msra.mxu0 0.0
        %368 = vmatprep.subr.mxu0 0.0
        %369 = vmatpush1.msra.mxu0 0.0
        %370 = vmatprep.subr.mxu0 0.0
        %371 = vmatpush1.msra.mxu0 0.0
        %372 = vmatprep.subr.mxu0 0.0
        %373 = vmatpush1.msra.mxu0 0.0
        %374 = vmatprep.subr.mxu0 0.0
        %375 = vmatpush1.msra.mxu0 0.0
        %376 = vmatprep.subr.mxu0 0.0
        %377 = vmatpush1.msra.mxu0 0.0
        %378 = vmatprep.subr.mxu0 0.0
        %379 = vmatpush1.msra.mxu0 0.0
        %380 = vmatprep.subr.mxu0 0.0
        %381 = vmatpush1.msra.mxu0 0.0
        %382 = vmatprep.subr.mxu0 0.0
        %383 = vmatpush1.msra.mxu0 0.0
        %384 = vmatprep.subr.mxu0 0.0
        %385 = vmatpush1.msra.mxu0 0.0
        %386 = vmatprep.subr.mxu0 0.0
        %387 = vmatpush1.msra.mxu0 0.0
        %388 = vmatprep.subr.mxu0 0.0
        %389 = vmatpush1.msra.mxu0 0.0
        %390 = vmatprep.subr.mxu0 0.0
        %391 = vmatpush1.msra.mxu0 %v358
        %392 = vmatprep.subr.mxu0 0.0
        %393 = vmatpush1.msra.mxu0 %v357
        %394 = vmatprep.subr.mxu0 0.0
        %395 = vmatpush1.msra.mxu0 %v356
        %396 = vmatprep.subr.mxu0 0.0
        %397 = vmatpush1.msra.mxu0 %v355
        %398 = vmatprep.subr.mxu0 0.0
        %399 = vmatpush2.msra.mxu0 0.0
        %400 = vmatprep.subr.mxu0 0.0
        %401 = vmatpush2.msra.mxu0 0.0
        %402 = vmatprep.subr.mxu0 0.0
        %403 = vmatpush2.msra.mxu0 0.0
        %404 = vmatprep.subr.mxu0 0.0
        %405 = vmatpush2.msra.mxu0 0.0
        %406 = vmatprep.subr.mxu0 0.0
        %407 = vmatpush2.msra.mxu0 0.0
        %408 = vmatprep.subr.mxu0 0.0
        %409 = vmatpush2.msra.mxu0 0.0
        %410 = vmatprep.subr.mxu0 0.0
        %411 = vmatpush2.msra.mxu0 0.0
        %412 = vmatprep.subr.mxu0 0.0
        %413 = vmatpush2.msra.mxu0 0.0
        %414 = vmatprep.subr.mxu0 0.0
        %415 = vmatpush2.msra.mxu0 0.0
        %416 = vmatprep.subr.mxu0 0.0
        %417 = vmatpush2.msra.mxu0 0.0
        %418 = vmatprep.subr.mxu0 0.0
        %419 = vmatpush2.msra.mxu0 0.0
        %420 = vmatprep.subr.mxu0 0.0
        %421 = vmatpush2.msra.mxu0 0.0
        %422 = vmatprep.subr.mxu0 0.0
        %423 = vmatpush2.msra.mxu0 0.0
        %424 = vmatprep.subr.mxu0 0.0
        %425 = vmatpush2.msra.mxu0 0.0
        %426 = vmatprep.subr.mxu0 0.0
        %427 = vmatpush2.msra.mxu0 0.0
        %428 = vmatprep.subr.mxu0 0.0
        %429 = vmatpush2.msra.mxu0 0.0
        %430 = vmatprep.mubr.f32.mxu0 0.0
        %431 = vmatmul.mubr.f32.gmra.mxu0 %v283
        %v432 = vpop.f32.mrf.mxu0
        %v433 = vadd.f32 %v364, %v432
        %v434 = vpop.f32.mrf.mxu0
        %435 = vdwg.mxu0
        %v437 = vsel %vm281, %v352, 0
        %v440 = vsel %vm281, %v433, 0
        %442 = vmatprep.subr.mxu0 0.0
        %443 = vmatpush1.xpose.msra.mxu0 0.0
        %444 = vmatprep.subr.mxu0 0.0
        %445 = vmatpush1.xpose.msra.mxu0 0.0
        %446 = vmatprep.subr.mxu0 0.0
        %447 = vmatpush1.xpose.msra.mxu0 0.0
        %448 = vmatprep.subr.mxu0 0.0
        %449 = vmatpush1.xpose.msra.mxu0 0.0
        %450 = vmatprep.subr.mxu0 0.0
        %451 = vmatpush1.xpose.msra.mxu0 0.0
        %452 = vmatprep.subr.mxu0 0.0
        %453 = vmatpush1.xpose.msra.mxu0 0.0
        %454 = vmatprep.subr.mxu0 0.0
        %455 = vmatpush1.xpose.msra.mxu0 0.0
        %456 = vmatprep.subr.mxu0 0.0
        %457 = vmatpush1.xpose.msra.mxu0 0.0
        %458 = vmatprep.subr.mxu0 0.0
        %459 = vmatpush1.xpose.msra.mxu0 0.0
        %460 = vmatprep.subr.mxu0 0.0
        %461 = vmatpush1.xpose.msra.mxu0 0.0
        %462 = vmatprep.subr.mxu0 0.0
        %463 = vmatpush1.xpose.msra.mxu0 0.0
        %464 = vmatprep.subr.mxu0 0.0
        %465 = vmatpush1.xpose.msra.mxu0 0.0
        %466 = vmatprep.subr.mxu0 0.0
        %467 = vmatpush1.xpose.msra.mxu0 0.0
        %468 = vmatprep.subr.mxu0 0.0
        %469 = vmatpush1.xpose.msra.mxu0 0.0
        %470 = vmatprep.subr.mxu0 0.0
        %471 = vmatpush1.xpose.msra.mxu0 0.0
        %472 = vmatprep.subr.mxu0 0.0
        %473 = vmatpush1.xpose.msra.mxu0 %v440
        %474 = vmatprep.subr.mxu0 0.0
        %475 = vmatpush2.xpose.msra.mxu0 0.0
        %476 = vmatprep.subr.mxu0 0.0
        %477 = vmatpush2.xpose.msra.mxu0 0.0
        %478 = vmatprep.subr.mxu0 0.0
        %479 = vmatpush2.xpose.msra.mxu0 0.0
        %480 = vmatprep.subr.mxu0 0.0
        %481 = vmatpush2.xpose.msra.mxu0 0.0
        %482 = vmatprep.subr.mxu0 0.0
        %483 = vmatpush2.xpose.msra.mxu0 0.0
        %484 = vmatprep.subr.mxu0 0.0
        %485 = vmatpush2.xpose.msra.mxu0 0.0
        %486 = vmatprep.subr.mxu0 0.0
        %487 = vmatpush2.xpose.msra.mxu0 0.0
        %488 = vmatprep.subr.mxu0 0.0
        %489 = vmatpush2.xpose.msra.mxu0 0.0
        %490 = vmatprep.subr.mxu0 0.0
        %491 = vmatpush2.xpose.msra.mxu0 0.0
        %492 = vmatprep.subr.mxu0 0.0
        %493 = vmatpush2.xpose.msra.mxu0 0.0
        %494 = vmatprep.subr.mxu0 0.0
        %495 = vmatpush2.xpose.msra.mxu0 0.0
        %496 = vmatprep.subr.mxu0 0.0
        %497 = vmatpush2.xpose.msra.mxu0 0.0
        %498 = vmatprep.subr.mxu0 0.0
        %499 = vmatpush2.xpose.msra.mxu0 0.0
        %500 = vmatprep.subr.mxu0 0.0
        %501 = vmatpush2.xpose.msra.mxu0 0.0
        %502 = vmatprep.subr.mxu0 0.0
        %503 = vmatpush2.xpose.msra.mxu0 0.0
        %504 = vmatprep.subr.mxu0 0.0
        %505 = vmatpush2.xpose.msra.mxu0 0.0
        %506 = vmatprep.mubr.f32.mxu0 0.0
        %507 = vmatmul.mubr.f32.gmra.mxu0 %v437
        %v508 = vpop.f32.mrf.mxu0
        %v509 = vadd.f32 0.0, %v508
        %v510 = vpop.f32.mrf.mxu0
        %511 = vdwg.mxu0
        %vm512 = vcmask 64512
        %513 = vst.msk [vmem:[%s268] sm:$0xff] %vm512, %v509
        %s514 = sand.u32 %s141, 1
        %s515 = scalar_lea.sflag [#allocation4], %s514
        %s516 = sand.u32 %s141, 1
        %s517 = smul.addr %s516, 8
        %s518 = scalar_lea.vmem [#allocation8], %s517
        // Predicated region
        $region53: #{tpu_custom_call.1} parent=39 // pred_check
          %p519 = pneg %p151
        $region54: #{tpu_custom_call.1} parent=39 // pred_check_branch
          %521 = sbr.rel (%p519) target = $region56
        $region55: #{tpu_custom_call.1} parent=39 // pred_region
          %s523 = ssub.s32 128, 128
          %524 = vsyncadd %s515, %s523
          %s525 = smul.addr %s23, 128
          %s526 = scalar_lea.hbm %s5, %s525
          %s528 = sshll.u32 %s518, 4
          %s529 = int_to_ptr.vmem [resolvable:$true] %s528
          %531 = dma.vmem_to_hbm [thread:$0]  %s529, 128, %s526, %s515
        $region56: #{tpu_custom_call.1} parent=39 // pred_fallthru
          _
      $region40: #{tpu_custom_call.1} parent=5 // pred_fallthru
        _
      %p532 = scmp.le.s32.totalorder 2, %s18
      // Predicated region
      $region57: #{tpu_custom_call.1} parent=5 // pred_check
        %p533 = pneg %p532
      $region58: #{tpu_custom_call.1} parent=5 // pred_check_branch
        %535 = sbr.rel (%p533) target = $region60
      $region59: #{tpu_custom_call.1} parent=5 // pred_region
        %s536 = ssub.s32 %s18, 2
        // Predicated region
        $region61: #{tpu_custom_call.1} parent=59 // pred_check
          %p537 = pneg %p157
        $region62: #{tpu_custom_call.1} parent=59 // pred_check_branch
          %539 = sbr.rel (%p537) target = $region64
        $region63: #{tpu_custom_call.1} parent=59 // pred_region
          %s540 = sand.u32 %s142, 1
          %s541 = scalar_lea.sflag [#allocation4], %s540
          %s542 = sand.u32 %s142, 1
          %s543 = smul.addr %s542, 8
          %s544 = scalar_lea.vmem [#allocation8], %s543
          %545 = dma.done %s541, 128
        $region64: #{tpu_custom_call.1} parent=59 // pred_fallthru
          _
      $region60: #{tpu_custom_call.1} parent=5 // pred_fallthru
        _
    $region6: #{tpu_custom_call.1} parent=1 // loop_footer
      %s22 = sadd.s32 1, %s18
    $region7: #{tpu_custom_call.1} parent=1 // loop_footer_branch
      %17 = sbr.rel target = $region3
    $region8: #{tpu_custom_call.1} parent=1 // loop_exit
      _
    %546 = vsyncpa [#allocation3], 1
    %s547 = scalar_lea.sflag [#allocation3], 1
    %548 = vsyncpa %s547, 1
    %549 = vsyncpa [#allocation6], 1
    %550 = vsyncpa [#allocation4], 1
    %s551 = scalar_lea.sflag [#allocation4], 1
    %552 = vsyncpa %s551, 1

</llo_original>
